<compile_context>
chip_gen: v6e
topology: v6e:2x2x1
jax: 0.10.0
libtpu: 0.0.40
codegen_flags: <defaults>
</compile_context>

<pallas_src>
import functools

import jax
import jax.numpy as jnp
from jax.experimental import pallas as pl
from jax.experimental.pallas import tpu as pltpu

EPS = 1e-6


def _l1_grad_kernel(x_ref, y_ref, xsum_ref, ysum_ref, accx_ref, accy_ref, *, H, W):
    step = pl.program_id(0)
    HW = H * W

    # Zero the vreg-shaped accumulators on the first grid step.
    @pl.when(step == 0)
    def _():
        accx_ref[...] = jnp.zeros_like(accx_ref)
        accy_ref[...] = jnp.zeros_like(accy_ref)

    x = x_ref[...]  # (TB, H*W), input dtype
    y = y_ref[...]

    # Lane index within each flattened (row-major H x W) image.
    lane = jax.lax.broadcasted_iota(jnp.int32, x.shape, 1)

    # ---- Vertical (H-axis) gradient: neighbor W lanes ahead (next row). ----
    # roll by HW - W  <=>  rolled[i] = x[(i + W) mod HW]
    xh = pltpu.roll(x, shift=HW - W, axis=1)
    yh = pltpu.roll(y, shift=HW - W, axis=1)
    dh = ((xh - x) - (yh - y)).astype(jnp.float32)
    err_h = jnp.sqrt(dh * dh + EPS)
    mask_h = lane < (H - 1) * W  # drop wrapped last row
    accx_ref[...] += jnp.where(mask_h, err_h, 0.0)

    # ---- Horizontal (W-axis) gradient: neighbor 1 lane ahead (same row). ----
    # roll by HW - 1  <=>  rolled[i] = x[(i + 1) mod HW]
    xw = pltpu.roll(x, shift=HW - 1, axis=1)
    yw = pltpu.roll(y, shift=HW - 1, axis=1)
    dw = ((xw - x) - (yw - y)).astype(jnp.float32)
    err_w = jnp.sqrt(dw * dw + EPS)
    mask_w = (lane % W) != (W - 1)  # drop wrap across the row boundary
    accy_ref[...] += jnp.where(mask_w, err_w, 0.0)

    # ---- Epilogue: single full reduce + scalar store on the last step. ----
    @pl.when(step == pl.num_programs(0) - 1)
    def _():
        xsum_ref[...] = jnp.broadcast_to(jnp.sum(accx_ref[...]), (1, 1))
        ysum_ref[...] = jnp.broadcast_to(jnp.sum(accy_ref[...]), (1, 1))


def _choose_tb(B, HW, itemsize, budget_bytes=1 << 20):
    """Largest batch tile that keeps one input block around ~1 MiB."""
    if B * HW * itemsize <= budget_bytes:
        return B  # single grid step, full batch in one block
    max_tb = max(8, (budget_bytes // (HW * itemsize)) // 8 * 8)
    tb = min(B - (B % 8), max_tb)
    while tb >= 8:
        if B % tb == 0:
            return tb
        tb -= 8
    return B  # fallback: one big block (still correct)


def l1_gradient_loss(X, Y):
    """Pallas implementation of L1_Gradient_loss.forward for NCHW inputs."""
    N, C, H, W = X.shape
    B = N * C
    HW = H * W

    # Row-major contiguous flatten: each image becomes one lane-dense row.
    xb = X.reshape(B, HW)
    yb = Y.reshape(B, HW)

    TB = _choose_tb(B, HW, X.dtype.itemsize)
    grid = (B // TB,)

    kernel = functools.partial(_l1_grad_kernel, H=H, W=W)

    xsum, ysum = pl.pallas_call(
        kernel,
        out_shape=(
            jax.ShapeDtypeStruct((1, 1), jnp.float32),
            jax.ShapeDtypeStruct((1, 1), jnp.float32),
        ),
        grid_spec=pltpu.PrefetchScalarGridSpec(
            num_scalar_prefetch=0,
            grid=grid,
            in_specs=[
                pl.BlockSpec((TB, HW), lambda b: (b, 0)),
                pl.BlockSpec((TB, HW), lambda b: (b, 0)),
            ],
            out_specs=[
                pl.BlockSpec((1, 1), lambda b: (0, 0)),
                pl.BlockSpec((1, 1), lambda b: (0, 0)),
            ],
            scratch_shapes=[
                pltpu.VMEM((TB, HW), jnp.float32),
                pltpu.VMEM((TB, HW), jnp.float32),
            ],
        ),
        compiler_params=pltpu.CompilerParams(
            dimension_semantics=("arbitrary",),
        ),
    )(xb, yb)

    # Charbonnier loss = mean of each error tensor (different element counts).
    n_x = B * (H - 1) * W
    n_y = B * H * (W - 1)
    xl = xsum[0, 0] / n_x
    yl = ysum[0, 0] / n_y
    return (xl + yl) * 0.5


def _reference(X, Y):
    # Pure-JAX reference mirroring the PyTorch module.
    xgin = X[:, :, 1:, :] - X[:, :, :-1, :]
    ygin = X[:, :, :, 1:] - X[:, :, :, :-1]
    xgt = Y[:, :, 1:, :] - Y[:, :, :-1, :]
    ygt = Y[:, :, :, 1:] - Y[:, :, :, :-1]

    def charb(a, b):
        d = a - b
        return jnp.mean(jnp.sqrt(d * d + EPS))

    return (charb(xgin, xgt) + charb(ygin, ygt)) * 0.5


if __name__ == "__main__":
    key = jax.random.PRNGKey(0)
    kx, ky = jax.random.split(key)
    N, C, H, W = 2, 4, 16, 16
    X = jax.random.normal(kx, (N, C, H, W), dtype=jnp.float32)
    Y = jax.random.normal(ky, (N, C, H, W), dtype=jnp.float32)

    loss = l1_gradient_loss(X, Y)
    loss = jax.block_until_ready(loss)

    ref = _reference(X, Y)
    assert jnp.allclose(loss, ref, rtol=1e-5, atol=1e-6), (loss, ref)

    print("KERNEL_OK")
</pallas_src>

<mosaic_0001>
module attributes {stable_mosaic.version = 11 : i64} {
  func.func @_l1_grad_kernel(%arg0: i32, %arg1: memref<8x256xf32, #tpu.memory_space<vmem>>, %arg2: memref<8x256xf32, #tpu.memory_space<vmem>>, %arg3: memref<1x1xf32, #tpu.memory_space<vmem>>, %arg4: memref<1x1xf32, #tpu.memory_space<vmem>>, %arg5: memref<8x256xf32, #tpu.memory_space<vmem>>, %arg6: memref<8x256xf32, #tpu.memory_space<vmem>>) attributes {dimension_semantics = [#tpu.dimension_semantics<arbitrary>], iteration_bounds = array<i64: 1>, scalar_prefetch = 0 : i64, scratch_operands = 2 : i64, tpu.core_type = #tpu.core_type<tc>, window_params = [{transform_indices = @transform_0, window_bounds = array<i64: 8, 256>}, {transform_indices = @transform_1, window_bounds = array<i64: 8, 256>}, {pipeline_mode = #tpu.pipeline_mode<synchronous>, transform_indices = @transform_2, window_bounds = array<i64: 1, 1>}, {pipeline_mode = #tpu.pipeline_mode<synchronous>, transform_indices = @transform_3, window_bounds = array<i64: 1, 1>}]} {
    %c0_i32 = arith.constant 0 : i32
    %0 = arith.cmpi eq, %arg0, %c0_i32 : i32
    %1 = arith.extui %0 : i1 to i32
    %c0_i32_0 = arith.constant 0 : i32
    %2 = arith.cmpi ne, %1, %c0_i32_0 : i32
    scf.if %2 {
      %cst_24 = arith.constant 0.000000e+00 : f32
      %57 = vector.broadcast %cst_24 : f32 to vector<8x256xf32>
      %c0_25 = arith.constant 0 : index
      %c0_26 = arith.constant 0 : index
      %58 = vector.load %arg5[%c0_25, %c0_26] : memref<8x256xf32, #tpu.memory_space<vmem>>, vector<8x256xf32>
      tpu.vector_store %arg5[%c0_25, %c0_26], %57 {strides = array<i32>} : memref<8x256xf32, #tpu.memory_space<vmem>>, vector<8x256xf32>,
      %cst_27 = arith.constant 0.000000e+00 : f32
      %59 = vector.broadcast %cst_27 : f32 to vector<8x256xf32>
      %c0_28 = arith.constant 0 : index
      %c0_29 = arith.constant 0 : index
      %60 = vector.load %arg6[%c0_28, %c0_29] : memref<8x256xf32, #tpu.memory_space<vmem>>, vector<8x256xf32>
      tpu.vector_store %arg6[%c0_28, %c0_29], %59 {strides = array<i32>} : memref<8x256xf32, #tpu.memory_space<vmem>>, vector<8x256xf32>,
    } else {
    }
    %c0 = arith.constant 0 : index
    %c0_1 = arith.constant 0 : index
    %3 = vector.load %arg1[%c0, %c0_1] : memref<8x256xf32, #tpu.memory_space<vmem>>, vector<8x256xf32>
    %c0_2 = arith.constant 0 : index
    %c0_3 = arith.constant 0 : index
    %4 = vector.load %arg2[%c0_2, %c0_3] : memref<8x256xf32, #tpu.memory_space<vmem>>, vector<8x256xf32>
    %5 = tpu.iota {dimensions = array<i32: 1>} : vector<8x256xi32>
    %c240_i32 = arith.constant 240 : i32
    %6 = tpu.dynamic_rotate %3 by %c240_i32 dim 1 : vector<8x256xf32>, i32 -> vector<8x256xf32>
    %c240_i32_4 = arith.constant 240 : i32
    %7 = tpu.dynamic_rotate %4 by %c240_i32_4 dim 1 : vector<8x256xf32>, i32 -> vector<8x256xf32>
    %8 = arith.subf %6, %3 : vector<8x256xf32>
    %9 = arith.subf %7, %4 : vector<8x256xf32>
    %10 = arith.subf %8, %9 : vector<8x256xf32>
    %11 = arith.mulf %10, %10 : vector<8x256xf32>
    %cst = arith.constant 9.99999997E-7 : f32
    %12 = vector.broadcast %cst : f32 to vector<8x256xf32>
    %13 = arith.addf %11, %12 : vector<8x256xf32>
    %14 = math.sqrt %13 : vector<8x256xf32>
    %c240_i32_5 = arith.constant 240 : i32
    %15 = vector.broadcast %c240_i32_5 : i32 to vector<8x256xi32>
    %16 = arith.cmpi slt, %5, %15 : vector<8x256xi32>
    %c0_6 = arith.constant 0 : index
    %c0_7 = arith.constant 0 : index
    %17 = vector.load %arg5[%c0_6, %c0_7] : memref<8x256xf32, #tpu.memory_space<vmem>>, vector<8x256xf32>
    %cst_8 = arith.constant 0.000000e+00 : f32
    %18 = vector.broadcast %cst_8 : f32 to vector<8x256xf32>
    %19 = arith.select %16, %14, %18 : vector<8x256xi1>, vector<8x256xf32>
    %20 = arith.addf %17, %19 : vector<8x256xf32>
    %c0_9 = arith.constant 0 : index
    %c0_10 = arith.constant 0 : index
    %21 = vector.load %arg5[%c0_9, %c0_10] : memref<8x256xf32, #tpu.memory_space<vmem>>, vector<8x256xf32>
    tpu.vector_store %arg5[%c0_9, %c0_10], %20 {strides = array<i32>} : memref<8x256xf32, #tpu.memory_space<vmem>>, vector<8x256xf32>,
    %c255_i32 = arith.constant 255 : i32
    %22 = tpu.dynamic_rotate %3 by %c255_i32 dim 1 : vector<8x256xf32>, i32 -> vector<8x256xf32>
    %c255_i32_11 = arith.constant 255 : i32
    %23 = tpu.dynamic_rotate %4 by %c255_i32_11 dim 1 : vector<8x256xf32>, i32 -> vector<8x256xf32>
    %24 = arith.subf %22, %3 : vector<8x256xf32>
    %25 = arith.subf %23, %4 : vector<8x256xf32>
    %26 = arith.subf %24, %25 : vector<8x256xf32>
    %27 = arith.mulf %26, %26 : vector<8x256xf32>
    %cst_12 = arith.constant 9.99999997E-7 : f32
    %28 = vector.broadcast %cst_12 : f32 to vector<8x256xf32>
    %29 = arith.addf %27, %28 : vector<8x256xf32>
    %30 = math.sqrt %29 : vector<8x256xf32>
    %c16_i32 = arith.constant 16 : i32
    %c0_i32_13 = arith.constant 0 : i32
    %31 = arith.cmpi eq, %c16_i32, %c0_i32_13 : i32
    %c1_i32 = arith.constant 1 : i32
    %32 = arith.select %31, %c1_i32, %c16_i32 : i32
    %33 = vector.broadcast %32 : i32 to vector<8x256xi32>
    %34 = arith.remsi %5, %33 : vector<8x256xi32>
    %c0_i32_14 = arith.constant 0 : i32
    %35 = vector.broadcast %c0_i32_14 : i32 to vector<8x256xi32>
    %36 = arith.cmpi ne, %34, %35 : vector<8x256xi32>
    %c0_i32_15 = arith.constant 0 : i32
    %37 = vector.broadcast %c0_i32_15 : i32 to vector<8x256xi32>
    %38 = arith.cmpi slt, %34, %37 : vector<8x256xi32>
    %c0_i32_16 = arith.constant 0 : i32
    %39 = arith.cmpi slt, %32, %c0_i32_16 : i32
    %40 = vector.broadcast %39 : i1 to vector<8x256xi1>
    %41 = vector.broadcast %40 : vector<8x256xi1> to vector<8x256xi1>
    %42 = arith.xori %38, %41 : vector<8x256xi1>
    %43 = arith.andi %42, %36 : vector<8x256xi1>
    %44 = vector.broadcast %32 : i32 to vector<8x256xi32>
    %45 = arith.addi %34, %44 : vector<8x256xi32>
    %46 = arith.select %43, %45, %34 : vector<8x256xi1>, vector<8x256xi32>
    %c15_i32 = arith.constant 15 : i32
    %47 = vector.broadcast %c15_i32 : i32 to vector<8x256xi32>
    %48 = arith.cmpi ne, %46, %47 : vector<8x256xi32>
    %c0_17 = arith.constant 0 : index
    %c0_18 = arith.constant 0 : index
    %49 = vector.load %arg6[%c0_17, %c0_18] : memref<8x256xf32, #tpu.memory_space<vmem>>, vector<8x256xf32>
    %cst_19 = arith.constant 0.000000e+00 : f32
    %50 = vector.broadcast %cst_19 : f32 to vector<8x256xf32>
    %51 = arith.select %48, %30, %50 : vector<8x256xi1>, vector<8x256xf32>
    %52 = arith.addf %49, %51 : vector<8x256xf32>
    %c0_20 = arith.constant 0 : index
    %c0_21 = arith.constant 0 : index
    %53 = vector.load %arg6[%c0_20, %c0_21] : memref<8x256xf32, #tpu.memory_space<vmem>>, vector<8x256xf32>
    tpu.vector_store %arg6[%c0_20, %c0_21], %52 {strides = array<i32>} : memref<8x256xf32, #tpu.memory_space<vmem>>, vector<8x256xf32>,
    %c0_i32_22 = arith.constant 0 : i32
    %54 = arith.cmpi eq, %arg0, %c0_i32_22 : i32
    %55 = arith.extui %54 : i1 to i32
    %c0_i32_23 = arith.constant 0 : i32
    %56 = arith.cmpi ne, %55, %c0_i32_23 : i32
    scf.if %56 {
      %c0_24 = arith.constant 0 : index
      %c0_25 = arith.constant 0 : index
      %57 = vector.load %arg5[%c0_24, %c0_25] : memref<8x256xf32, #tpu.memory_space<vmem>>, vector<8x256xf32>
      %58 = vector.shape_cast %57 : vector<8x256xf32> to vector<1x8x256xf32>
      %cst_26 = arith.constant dense<0.000000e+00> : vector<1xf32>
      %59 = vector.multi_reduction <add>, %58, %cst_26 [1, 2] : vector<1x8x256xf32> to vector<1xf32>
      %60 = vector.shape_cast %59 : vector<1xf32> to vector<1x1x1xf32>
      %61 = vector.extract %60[0, 0, 0] : f32 from vector<1x1x1xf32>
      %62 = vector.broadcast %61 : f32 to vector<1x1xf32>
      %c0_27 = arith.constant 0 : index
      %c0_28 = arith.constant 0 : index
      %63 = vector.load %arg3[%c0_27, %c0_28] : memref<1x1xf32, #tpu.memory_space<vmem>>, vector<1x1xf32>
      tpu.vector_store %arg3[%c0_27, %c0_28], %62 {strides = array<i32>} : memref<1x1xf32, #tpu.memory_space<vmem>>, vector<1x1xf32>,
      %c0_29 = arith.constant 0 : index
      %c0_30 = arith.constant 0 : index
      %64 = vector.load %arg6[%c0_29, %c0_30] : memref<8x256xf32, #tpu.memory_space<vmem>>, vector<8x256xf32>
      %65 = vector.shape_cast %64 : vector<8x256xf32> to vector<1x8x256xf32>
      %cst_31 = arith.constant dense<0.000000e+00> : vector<1xf32>
      %66 = vector.multi_reduction <add>, %65, %cst_31 [1, 2] : vector<1x8x256xf32> to vector<1xf32>
      %67 = vector.shape_cast %66 : vector<1xf32> to vector<1x1x1xf32>
      %68 = vector.extract %67[0, 0, 0] : f32 from vector<1x1x1xf32>
      %69 = vector.broadcast %68 : f32 to vector<1x1xf32>
      %c0_32 = arith.constant 0 : index
      %c0_33 = arith.constant 0 : index
      %70 = vector.load %arg4[%c0_32, %c0_33] : memref<1x1xf32, #tpu.memory_space<vmem>>, vector<1x1xf32>
      tpu.vector_store %arg4[%c0_32, %c0_33], %69 {strides = array<i32>} : memref<1x1xf32, #tpu.memory_space<vmem>>, vector<1x1xf32>,
    } else {
    }
    return
  }
  func.func @transform_0(%arg0: i32) -> (i32, i32) {
    %c0_i32 = arith.constant 0 : i32
    %c0_i32_0 = arith.constant 0 : i32
    return %arg0, %c0_i32 : i32, i32
  }
  func.func @transform_1(%arg0: i32) -> (i32, i32) {
    %c0_i32 = arith.constant 0 : i32
    %c0_i32_0 = arith.constant 0 : i32
    return %arg0, %c0_i32 : i32, i32
  }
  func.func @transform_2(%arg0: i32) -> (i32, i32) {
    %c0_i32 = arith.constant 0 : i32
    %c0_i32_0 = arith.constant 0 : i32
    %c0_i32_1 = arith.constant 0 : i32
    return %c0_i32, %c0_i32_0 : i32, i32
  }
  func.func @transform_3(%arg0: i32) -> (i32, i32) {
    %c0_i32 = arith.constant 0 : i32
    %c0_i32_0 = arith.constant 0 : i32
    %c0_i32_1 = arith.constant 0 : i32
    return %c0_i32, %c0_i32_0 : i32, i32
  }
}

</mosaic_0001>

<llo_original>
// kernel: tpu_custom_call.1
$region0: #{tpu_custom_call.1}
  #allocation0 [shape = 'u32[]', space=smem, size = 0x4, offset = 0x4, fixed_abs, tag = 'smem constant byte address 0x4 - core index']
  #allocation1 [shape = 'u32[144,128]{1,0:T(1,128)}', space=vmem, size = 0x12000, scoped, tag = 'internal scratch']
  #allocation2 [shape = 'f32[8,256]{1,0:T(8,128)}', space=vmem, size = 0x2000, scoped, tag = 'scratch operand']
  #allocation3 [shape = 'f32[8,256]{1,0:T(8,128)}', space=vmem, size = 0x2000, scoped, tag = 'scratch operand']
  %s0 = inlined_call_operand.hbm [shape: f32[8,256], index: 0, kind: input, shape index: {}]
  %s1 = inlined_call_operand.hbm [shape: f32[8,256], index: 1, kind: input, shape index: {}]
  %s2 = inlined_call_operand.hbm [shape: f32[1,1], index: 2, kind: output, shape index: {0}]
  %s3 = inlined_call_operand.hbm [shape: f32[1,1], index: 3, kind: output, shape index: {1}]
  %4 = xla_tuple %s2, %s3
  %s5 = sld [smem:[#allocation0]]
  $region42: #{tpu_custom_call.1} parent=0
    _
  %s7 = ssub.s32 1, %s5
  %s8 = scalar_select 0, %s7, %s5
  $region1: #{tpu_custom_call.1} parent=0
    #allocation4 [shape = 'u8[8192]{0}', space=vmem, size = 0x2000, scoped, tag = 'input window, operand 0, single buffered']
    #allocation5 [shape = 's32[1]{0}', space=sflag, size = 0x4, scoped, tag = 'scoped memory for tpu_custom_call.1']
    #allocation6 [shape = 's32[1]{0}', space=sflag, size = 0x4, scoped, tag = 'scoped memory for tpu_custom_call.1']
    #allocation7 [shape = 'u8[8192]{0}', space=vmem, size = 0x2000, scoped, tag = 'input window, operand 1, single buffered']
    #allocation8 [shape = 's32[1]{0}', space=sflag, size = 0x4, scoped, tag = 'scoped memory for tpu_custom_call.1']
    #allocation9 [shape = 'u8[512]{0}', space=vmem, size = 0x400, scoped, tag = 'output window, operand 0, single buffered']
    #allocation10 [shape = 'u8[512]{0}', space=vmem, size = 0x400, scoped, tag = 'output window, operand 1, single buffered']
    #allocation11 [shape = 's32[1]{0}', space=sflag, size = 0x4, scoped, tag = 'scoped memory for tpu_custom_call.1']
    %9 = vsyncpa [#allocation5], 0
    %10 = vsyncpa [#allocation8], 0
    %11 = vsyncpa [#allocation6], 0
    %12 = vsyncpa [#allocation11], 0
    // Predicated region
    $region2: #{tpu_custom_call.1} parent=1 // pred_check
      _
    $region3: #{tpu_custom_call.1} parent=1 // pred_check_branch
      %14 = sbr.rel (0) target = $region5
    $region4: #{tpu_custom_call.1} parent=1 // pred_region
      %s16 = ssub.s32 256, 256
      %17 = vsyncadd [#allocation5], %s16
      %s19 = sshll.u32 [#allocation4], 4
      %s20 = int_to_ptr.vmem [resolvable:$true] %s19
      %22 = dma.hbm_to_vmem [thread:$0]  %s0, 256, %s20, [#allocation5]
    $region5: #{tpu_custom_call.1} parent=1 // pred_fallthru
      _
    // Predicated region
    $region6: #{tpu_custom_call.1} parent=1 // pred_check
      _
    $region7: #{tpu_custom_call.1} parent=1 // pred_check_branch
      %24 = sbr.rel (0) target = $region9
    $region8: #{tpu_custom_call.1} parent=1 // pred_region
      %s26 = ssub.s32 256, 256
      %27 = vsyncadd [#allocation8], %s26
      %s29 = sshll.u32 [#allocation7], 4
      %s30 = int_to_ptr.vmem [resolvable:$true] %s29
      %32 = dma.hbm_to_vmem [thread:$0]  %s1, 256, %s30, [#allocation8]
    $region9: #{tpu_custom_call.1} parent=1 // pred_fallthru
      _
    // Predicated region
    $region10: #{tpu_custom_call.1} parent=1 // pred_check
      _
    $region11: #{tpu_custom_call.1} parent=1 // pred_check_branch
      %34 = sbr.rel (0) target = $region13
    $region12: #{tpu_custom_call.1} parent=1 // pred_region
      %35 = dma.done [#allocation5], 256
    $region13: #{tpu_custom_call.1} parent=1 // pred_fallthru
      _
    // Predicated region
    $region14: #{tpu_custom_call.1} parent=1 // pred_check
      _
    $region15: #{tpu_custom_call.1} parent=1 // pred_check_branch
      %37 = sbr.rel (0) target = $region17
    $region16: #{tpu_custom_call.1} parent=1 // pred_region
      %38 = dma.done [#allocation8], 256
    $region17: #{tpu_custom_call.1} parent=1 // pred_fallthru
      _
    %p39 = scmp.eq.s32.totalorder 0, 0
    // Predicated region
    $region18: #{tpu_custom_call.1} parent=1 // pred_check
      %p40 = pneg %p39
    $region19: #{tpu_custom_call.1} parent=1 // pred_check_branch
      %42 = sbr.rel (%p40) target = $region21
    $region20: #{tpu_custom_call.1} parent=1 // pred_region
      %43 = vst [vmem:[#allocation2] sm:$0xff] 0.0
      %44 = vst [vmem:[#allocation2 + $0x8] sm:$0xff] 0.0
      %45 = vst [vmem:[#allocation3] sm:$0xff] 0.0
      %46 = vst [vmem:[#allocation3 + $0x8] sm:$0xff] 0.0
    $region21: #{tpu_custom_call.1} parent=1 // pred_fallthru
      _
    %v47 = vld [vmem:[#allocation4] sm:$0xff]
    %v48 = vld [vmem:[#allocation4 + $0x8] sm:$0xff]
    %v49 = vld [vmem:[#allocation7] sm:$0xff]
    %v50 = vld [vmem:[#allocation7 + $0x8] sm:$0xff]
    %v51 = vlaneseq
    %v52 = vand.u32 %v51, 127
    %v53 = vadd.s32 %v52, 128
    %54 = vrot.lane.b32.xlu0 %v47, 112
    %v55 = vpop.permute.xlu0 %54
    %56 = vrot.lane.b32.xlu0 %v48, 112
    %v57 = vpop.permute.xlu0 %56
    %vm58 = vcmp.lt.s32.totalorder %v52, 112
    %v59 = vsel %vm58, %v55, %v57
    %v60 = vsel %vm58, %v57, %v55
    %61 = vrot.lane.b32.xlu0 %v49, 112
    %v62 = vpop.permute.xlu0 %61
    %63 = vrot.lane.b32.xlu0 %v50, 112
    %v64 = vpop.permute.xlu0 %63
    %v65 = vsel %vm58, %v62, %v64
    %v66 = vsel %vm58, %v64, %v62
    %v67 = vsub.f32 %v59, %v47
    %v68 = vsub.f32 %v60, %v48
    %v69 = vsub.f32 %v65, %v49
    %v70 = vsub.f32 %v66, %v50
    %v71 = vsub.f32 %v67, %v69
    %v72 = vsub.f32 %v68, %v70
    %v73 = vmul.f32 %v71, %v71
    %v74 = vmul.f32 %v72, %v72
    %v75 = vadd.f32 %v73, 1e-06
    %v76 = vadd.f32 %v74, 1e-06
    %v77 = vrsqrt.pop %v75
    %v78 = vmul.f32 %v75, %v77
    %vm79 = vcmp.eq.f32.partialorder %v75, inf
    %v80 = vsel %vm79, %v75, %v78
    %vm81 = vcmp.eq.f32.partialorder %v75, 0.0
    %v82 = vand.u32 %v75, 2147483648
    %v83 = vsel %vm81, %v82, %v80
    %v84 = vrsqrt.pop %v76
    %v85 = vmul.f32 %v76, %v84
    %vm86 = vcmp.eq.f32.partialorder %v76, inf
    %v87 = vsel %vm86, %v76, %v85
    %vm88 = vcmp.eq.f32.partialorder %v76, 0.0
    %v89 = vand.u32 %v76, 2147483648
    %v90 = vsel %vm88, %v89, %v87
    %vm91 = vcmp.lt.s32.totalorder %v52, 240
    %vm92 = vcmp.lt.s32.totalorder %v53, 240
    %v93 = vld [vmem:[#allocation2] sm:$0xff]
    %v94 = vld [vmem:[#allocation2 + $0x8] sm:$0xff]
    %v95 = vsel %vm91, %v83, 0.0
    %v96 = vsel %vm92, %v90, 0.0
    %v97 = vadd.f32 %v93, %v95
    %v98 = vadd.f32 %v94, %v96
    %99 = vst [vmem:[#allocation2] sm:$0xff] %v97
    %100 = vst [vmem:[#allocation2 + $0x8] sm:$0xff] %v98
    %101 = vrot.lane.b32.xlu0 %v47, 127
    %v102 = vpop.permute.xlu0 %101
    %103 = vrot.lane.b32.xlu0 %v48, 127
    %v104 = vpop.permute.xlu0 %103
    %vm105 = vcmp.lt.s32.totalorder %v52, 127
    %v106 = vsel %vm105, %v102, %v104
    %v107 = vsel %vm105, %v104, %v102
    %108 = vrot.lane.b32.xlu0 %v49, 127
    %v109 = vpop.permute.xlu0 %108
    %110 = vrot.lane.b32.xlu0 %v50, 127
    %v111 = vpop.permute.xlu0 %110
    %v112 = vsel %vm105, %v109, %v111
    %v113 = vsel %vm105, %v111, %v109
    %v114 = vsub.f32 %v106, %v47
    %v115 = vsub.f32 %v107, %v48
    %v116 = vsub.f32 %v112, %v49
    %v117 = vsub.f32 %v113, %v50
    %v118 = vsub.f32 %v114, %v116
    %v119 = vsub.f32 %v115, %v117
    %v120 = vmul.f32 %v118, %v118
    %v121 = vmul.f32 %v119, %v119
    %v122 = vadd.f32 %v120, 1e-06
    %v123 = vadd.f32 %v121, 1e-06
    %v124 = vrsqrt.pop %v122
    %v125 = vmul.f32 %v122, %v124
    %vm126 = vcmp.eq.f32.partialorder %v122, inf
    %v127 = vsel %vm126, %v122, %v125
    %vm128 = vcmp.eq.f32.partialorder %v122, 0.0
    %v129 = vand.u32 %v122, 2147483648
    %v130 = vsel %vm128, %v129, %v127
    %v131 = vrsqrt.pop %v123
    %v132 = vmul.f32 %v123, %v131
    %vm133 = vcmp.eq.f32.partialorder %v123, inf
    %v134 = vsel %vm133, %v123, %v132
    %vm135 = vcmp.eq.f32.partialorder %v123, 0.0
    %v136 = vand.u32 %v123, 2147483648
    %v137 = vsel %vm135, %v136, %v134
    %vm138 = vcmp.lt.s32.totalorder %v52, 0
    %v139 = vsub.s32 0, %v52
    %v140 = vsel %vm138, %v139, %v52
    %v141 = vshrl.u32 %v140, 4
    %v142 = vand.u32 %v140, 15
    %v143 = vsub.s32 0, %v142
    %v144 = vsel %vm138, %v143, %v142
    %vm145 = vcmp.lt.s32.totalorder %v53, 0
    %v146 = vsub.s32 0, %v53
    %v147 = vsel %vm145, %v146, %v53
    %v148 = vshrl.u32 %v147, 4
    %v149 = vand.u32 %v147, 15
    %v150 = vsub.s32 0, %v149
    %v151 = vsel %vm145, %v150, %v149
    %vm152 = vcmp.ne.s32.totalorder %v144, 0
    %vm153 = vcmp.ne.s32.totalorder %v151, 0
    %vm154 = vcmp.lt.s32.totalorder %v144, 0
    %vm155 = vcmp.lt.s32.totalorder %v151, 0
    %vm156 = vmand %vm154, %vm152
    %vm157 = vmand %vm155, %vm153
    %v158 = vadd.s32 %v144, 16
    %v159 = vadd.s32 %v151, 16
    %v160 = vsel %vm156, %v158, %v144
    %v161 = vsel %vm157, %v159, %v151
    %vm162 = vcmp.ne.s32.totalorder %v160, 15
    %vm163 = vcmp.ne.s32.totalorder %v161, 15
    %v164 = vld [vmem:[#allocation3] sm:$0xff]
    %v165 = vld [vmem:[#allocation3 + $0x8] sm:$0xff]
    %v166 = vsel %vm162, %v130, 0.0
    %v167 = vsel %vm163, %v137, 0.0
    %v168 = vadd.f32 %v164, %v166
    %v169 = vadd.f32 %v165, %v167
    %170 = vst [vmem:[#allocation3] sm:$0xff] %v168
    %171 = vst [vmem:[#allocation3 + $0x8] sm:$0xff] %v169
    // Predicated region
    $region22: #{tpu_custom_call.1} parent=1 // pred_check
      %p172 = pneg %p39
    $region23: #{tpu_custom_call.1} parent=1 // pred_check_branch
      %174 = sbr.rel (%p172) target = $region25
    $region24: #{tpu_custom_call.1} parent=1 // pred_region
      %v175 = vld [vmem:[#allocation2] sm:$0xff]
      %v176 = vld [vmem:[#allocation2 + $0x8] sm:$0xff]
      %v177 = vadd.f32 %v175, %v176
      %178 = vadd.xlane.f32.xlu0 %v177
      %v179 = vpop.xlane.xlu0 %178
      %v180 = vrot.slane %v179, 4
      %v181 = vadd.f32 %v179, %v180
      %v182 = vrot.slane %v181, 2
      %v183 = vadd.f32 %v181, %v182
      %v184 = vrot.slane %v183, 1
      %v185 = vadd.f32 %v183, %v184
      %s186 = vtos %v185
      %v187 = vstv %s186
      %vm188 = vcmask 0
      %189 = vst.msk [vmem:[#allocation9] sm:$0x1] %vm188, %v187
      %v190 = vld [vmem:[#allocation3] sm:$0xff]
      %v191 = vld [vmem:[#allocation3 + $0x8] sm:$0xff]
      %v192 = vadd.f32 %v190, %v191
      %193 = vadd.xlane.f32.xlu0 %v192
      %v194 = vpop.xlane.xlu0 %193
      %v195 = vrot.slane %v194, 4
      %v196 = vadd.f32 %v194, %v195
      %v197 = vrot.slane %v196, 2
      %v198 = vadd.f32 %v196, %v197
      %v199 = vrot.slane %v198, 1
      %v200 = vadd.f32 %v198, %v199
      %s201 = vtos %v200
      %v202 = vstv %s201
      %203 = vst.msk [vmem:[#allocation10] sm:$0x1] %vm188, %v202
    $region25: #{tpu_custom_call.1} parent=1 // pred_fallthru
      _
    // Predicated region
    $region26: #{tpu_custom_call.1} parent=1 // pred_check
      _
    $region27: #{tpu_custom_call.1} parent=1 // pred_check_branch
      %205 = sbr.rel (0) target = $region29
    $region28: #{tpu_custom_call.1} parent=1 // pred_region
      %s207 = ssub.s32 16, 16
      %208 = vsyncadd [#allocation6], %s207
      %s210 = sshll.u32 [#allocation9], 4
      %s211 = int_to_ptr.vmem [resolvable:$true] %s210
      %213 = dma.vmem_to_hbm [thread:$0]  %s211, 16, %s2, [#allocation6]
    $region29: #{tpu_custom_call.1} parent=1 // pred_fallthru
      _
    // Predicated region
    $region30: #{tpu_custom_call.1} parent=1 // pred_check
      _
    $region31: #{tpu_custom_call.1} parent=1 // pred_check_branch
      %215 = sbr.rel (0) target = $region33
    $region32: #{tpu_custom_call.1} parent=1 // pred_region
      %s217 = ssub.s32 16, 16
      %218 = vsyncadd [#allocation11], %s217
      %s220 = sshll.u32 [#allocation10], 4
      %s221 = int_to_ptr.vmem [resolvable:$true] %s220
      %223 = dma.vmem_to_hbm [thread:$0]  %s221, 16, %s3, [#allocation11]
    $region33: #{tpu_custom_call.1} parent=1 // pred_fallthru
      _
    // Predicated region
    $region34: #{tpu_custom_call.1} parent=1 // pred_check
      _
    $region35: #{tpu_custom_call.1} parent=1 // pred_check_branch
      %225 = sbr.rel (0) target = $region37
    $region36: #{tpu_custom_call.1} parent=1 // pred_region
      %226 = dma.done [#allocation6], 16
    $region37: #{tpu_custom_call.1} parent=1 // pred_fallthru
      _
    // Predicated region
    $region38: #{tpu_custom_call.1} parent=1 // pred_check
      _
    $region39: #{tpu_custom_call.1} parent=1 // pred_check_branch
      %228 = sbr.rel (0) target = $region41
    $region40: #{tpu_custom_call.1} parent=1 // pred_region
      %229 = dma.done [#allocation11], 16
    $region41: #{tpu_custom_call.1} parent=1 // pred_fallthru
      _
    %230 = vsyncpa [#allocation5], 1
    %231 = vsyncpa [#allocation8], 1
    %232 = vsyncpa [#allocation6], 1
    %233 = vsyncpa [#allocation11], 1

</llo_original>
